<compile_context>
chip_gen: v7x
topology: tpu7x:2x2x1
jax: 0.10.0
libtpu: 0.0.40
codegen_flags: <defaults>
</compile_context>

<pallas_src>
import functools

import jax
import jax.numpy as jnp
from jax.experimental import pallas as pl
from jax.experimental.pallas import tpu as pltpu


def _matmul_dtype():
    # bf16 matmuls are MXU-native on TPU.  Non-TPU backends (CPU interpret
    # harness) reject BF16 x BF16 = F32 dots, so fall back to f32 there.
    return jnp.bfloat16 if jax.default_backend() == "tpu" else jnp.float32


def _sigmoid(x):
    # sigmoid(x) == 0.5 * tanh(0.5 * x) + 0.5  (exact identity); keeps each
    # gate nonlinearity a single EUP (tanh) op instead of exp + divide.
    return 0.5 * jnp.tanh(0.5 * x) + 0.5


def _round_up(x, m):
    return ((x + m - 1) // m) * m


def _pick_time_block(T, tb_block):
    """Largest divisor of T <= tb_block (so no tail mask), else tb_block."""
    tb_block = max(1, min(tb_block, T))
    for d in range(tb_block, 0, -1):
        if T % d == 0:
            if d >= max(1, tb_block // 2):
                return d
            break
    return tb_block            # ragged tail -> masked in-kernel


def _pick_batch_block(B, batch_block):
    """Batch block size; guarantees >=2 blocks when B >= 256 (megacore)."""
    batch_block = max(8, _round_up(batch_block, 8))
    if B <= batch_block:
        if B >= 256:
            Bb = _round_up(-(-B // 2), 8)   # two blocks -> both TensorCores
        else:
            Bb = B                          # single full block (tiny batches)
    else:
        Bb = batch_block
    n_bb = -(-B // Bb)
    return Bb, n_bb, n_bb * Bb


def _vmem_limit_bytes():
    """Per-generation VMEM limit (~7/8 of physical), None off-TPU."""
    try:
        if jax.default_backend() == "tpu":
            cap = pltpu.get_tpu_info().vmem_capacity_bytes
            return int(cap * 7 // 8)
    except Exception:
        pass
    return None


def _lstm_recurrent_kernel(T_total, Tb, matmul_dtype, unroll,
                           xg_ref, bias_ref, whh_ref, h_ref, c_ref):
    """One grid step: Tb LSTM-cell updates with h/c resident in VMEM.

    xg_ref  : (Tb, Bb, 4H) bf16  precomputed x@W_ih^T, time-major
    bias_ref: (1, 4H)      f32   fused bias b_ih + b_hh (added in f32)
    whh_ref : (H, 4H)      bf16/f32  recurrent weights (constant block index)
    h_ref   : (Bb, H)      f32   OUTPUT block; doubles as the resident h state
    c_ref   : (Bb, H)      f32   VMEM scratch holding the resident c state
    """
    tb = pl.program_id(1)            # time-block index (sequential axis)

    @pl.when(tb == 0)
    def _():
        h_ref[...] = jnp.zeros_like(h_ref)
        c_ref[...] = jnp.zeros_like(c_ref)

    H = c_ref.shape[-1]
    w_hh = whh_ref[...]              # (H, 4H); DMA'd with constant block index
    bias = bias_ref[...]             # (1, 4H) f32

    masked_tail = (T_total % Tb) != 0            # static Python bool; only the
                                                 # ragged-T path emits selects

    def step(s, carry):
        h, c = carry                             # (Bb, H) f32 each
        # gates = [x_t @ W_ih^T] (bf16 stream, cast up) + b (f32) + h @ W_hh^T
        gates = (xg_ref[s].astype(jnp.float32) + bias
                 + jnp.dot(h.astype(matmul_dtype), w_hh,
                           preferred_element_type=jnp.float32))
        # PyTorch gate order: i, f, g, o.
        # NOTE: for production sizes pick H as a multiple of 128 so these gate
        # slices land exactly on vreg lane boundaries.
        i_g = _sigmoid(gates[:, 0 * H:1 * H])
        f_g = _sigmoid(gates[:, 1 * H:2 * H])
        g_g = jnp.tanh(gates[:, 2 * H:3 * H])
        o_g = _sigmoid(gates[:, 3 * H:4 * H])
        c_new = f_g * c + i_g * g_g
        h_new = o_g * jnp.tanh(c_new)
        if masked_tail:
            # Freeze the state on padded (t >= T) steps of the last time block.
            valid = (tb * Tb + s) < T_total
            c_new = jnp.where(valid, c_new, c)
            h_new = jnp.where(valid, h_new, h)
        return h_new, c_new

    h_T, c_T = jax.lax.fori_loop(0, Tb, step, (h_ref[...], c_ref[...]),
                                 unroll=unroll)
    h_ref[...] = h_T
    c_ref[...] = c_T


def lstm_model_forward(x, params, tb_block=16, batch_block=256):
    """x: (B, T, I) float32, batch-first like PyTorch. Returns (B, O) float32."""
    w_ih, w_hh, bias, w_fc, b_fc = params        # pre-transposed, f32
    B, T, I = x.shape
    H = w_hh.shape[0]
    G = 4 * H

    mdt = _matmul_dtype()

    # Hoisted input projection (one big matmul), stored bf16 time-major
    # (T, B, 4H) — this is the dominant HBM stream, so halve it.
    xg = jnp.einsum('bti,ig->tbg', x.astype(mdt), w_ih.astype(mdt),
                    preferred_element_type=jnp.float32).astype(jnp.bfloat16)

    # Block sizes / padding.
    Tb = _pick_time_block(T, tb_block)
    n_tb = -(-T // Tb)
    Bb, n_bb, Bp = _pick_batch_block(B, batch_block)
    Tp = n_tb * Tb
    if Tp != T or Bp != B:
        xg = jnp.pad(xg, ((0, Tp - T), (0, Bp - B), (0, 0)))

    w_hh_m = w_hh.astype(mdt)
    unroll = int(min(4, Tb))         # bounded unroll: MXU cadence without spill

    kernel = functools.partial(_lstm_recurrent_kernel, T, Tb, mdt, unroll)

    compiler_kwargs = dict(dimension_semantics=("parallel", "arbitrary"))
    vlim = _vmem_limit_bytes()
    if vlim is not None:
        compiler_kwargs["vmem_limit_bytes"] = vlim

    h_T = pl.pallas_call(
        kernel,
        out_shape=jax.ShapeDtypeStruct((Bp, H), jnp.float32),
        grid_spec=pltpu.PrefetchScalarGridSpec(
            num_scalar_prefetch=0,
            grid=(n_bb, n_tb),                   # batch blocks outer, time inner
            in_specs=[
                pl.BlockSpec((Tb, Bb, G), lambda bb, tb: (tb, bb, 0)),  # xg
                pl.BlockSpec((1, G), lambda bb, tb: (0, 0)),            # bias
                # W_hh: constant block index -> DMA'd once per batch block.
                # (Could be single-buffered to save VMEM on v7x.)
                pl.BlockSpec((H, G), lambda bb, tb: (0, 0)),
            ],
            out_specs=pl.BlockSpec((Bb, H), lambda bb, tb: (bb, 0)),    # h state
            scratch_shapes=[pltpu.VMEM((Bb, H), jnp.float32)],          # c state
        ),
        compiler_params=pltpu.CompilerParams(**compiler_kwargs),
    )(xg, bias, w_hh_m)

    h_T = h_T[:B]
    # FC head applied once on h_T, outside the recurrent kernel.
    return jnp.dot(h_T.astype(mdt), w_fc.astype(mdt),
                   preferred_element_type=jnp.float32) + b_fc


def init_params(key, input_size, hidden_size, output_size):
    """Deterministic synthetic parameters (PyTorch-equivalent, pre-transposed)."""
    k = jax.random.split(key, 6)
    scale = 1.0 / jnp.sqrt(hidden_size)
    # PyTorch: weight_ih_l0 (4H, I), weight_hh_l0 (4H, H), bias_ih/hh (4H,)
    w_ih = jax.random.uniform(k[0], (4 * hidden_size, input_size),
                              minval=-scale, maxval=scale, dtype=jnp.float32)
    w_hh = jax.random.uniform(k[1], (4 * hidden_size, hidden_size),
                              minval=-scale, maxval=scale, dtype=jnp.float32)
    b_ih = jax.random.uniform(k[2], (4 * hidden_size,),
                              minval=-scale, maxval=scale, dtype=jnp.float32)
    b_hh = jax.random.uniform(k[3], (4 * hidden_size,),
                              minval=-scale, maxval=scale, dtype=jnp.float32)
    w_fc = jax.random.uniform(k[4], (output_size, hidden_size),
                              minval=-scale, maxval=scale, dtype=jnp.float32)
    b_fc = jax.random.uniform(k[5], (output_size,),
                              minval=-scale, maxval=scale, dtype=jnp.float32)
    return (w_ih.T,                              # (I, 4H)
            w_hh.T,                              # (H, 4H)
            (b_ih + b_hh)[None, :],              # (1, 4H)
            w_fc.T,                              # (H, O)
            b_fc[None, :])                       # (1, O)


def _reference_forward(x, params):
    """Pure-JAX reference mirroring the kernel's precision scheme (bf16 xg
    stream, f32 bias add / state / accumulation) of the PyTorch forward."""
    w_ih, w_hh, bias, w_fc, b_fc = params
    B, T, I = x.shape
    H = w_hh.shape[0]
    mdt = _matmul_dtype()
    xg = jnp.einsum('bti,ig->tbg', x.astype(mdt), w_ih.astype(mdt),
                    preferred_element_type=jnp.float32).astype(jnp.bfloat16)
    w_hh_m = w_hh.astype(mdt)
    h = jnp.zeros((B, H), jnp.float32)
    c = jnp.zeros((B, H), jnp.float32)
    for t in range(T):
        gates = (xg[t].astype(jnp.float32) + bias
                 + jnp.dot(h.astype(mdt), w_hh_m,
                           preferred_element_type=jnp.float32))
        i_g = _sigmoid(gates[:, 0 * H:1 * H])
        f_g = _sigmoid(gates[:, 1 * H:2 * H])
        g_g = jnp.tanh(gates[:, 2 * H:3 * H])
        o_g = _sigmoid(gates[:, 3 * H:4 * H])
        c = f_g * c + i_g * g_g
        h = o_g * jnp.tanh(c)
    return jnp.dot(h.astype(mdt), w_fc.astype(mdt),
                   preferred_element_type=jnp.float32) + b_fc


if __name__ == "__main__":
    # Small demo shapes consistent with the module's forward.
    B, T, I, H, O = 2, 10, 16, 32, 4
    key = jax.random.PRNGKey(0)
    kx, kp = jax.random.split(key)
    x = jax.random.normal(kx, (B, T, I), dtype=jnp.float32)
    params = init_params(kp, I, H, O)

    # tb_block=4 -> Tb=2 (divisor of T): multi-block time loop, no tail mask.
    out = lstm_model_forward(x, params, tb_block=4)
    out = jax.block_until_ready(out)
    ref = _reference_forward(x, params)
    assert out.shape == (B, O)
    assert jnp.allclose(out, ref, atol=1e-3, rtol=1e-3), (out, ref)

    # Prime T=7 with tb_block=4 exercises the ragged-tail masking path.
    T2 = 7
    x2 = jax.random.normal(jax.random.PRNGKey(1), (B, T2, I), dtype=jnp.float32)
    out2 = jax.block_until_ready(lstm_model_forward(x2, params, tb_block=4))
    ref2 = _reference_forward(x2, params)
    assert jnp.allclose(out2, ref2, atol=1e-3, rtol=1e-3), (out2, ref2)

    print("KERNEL_OK")
</pallas_src>

<mosaic_0001>
module attributes {stable_mosaic.version = 11 : i64} {
  func.func @_lstm_recurrent_kernel(%arg0: i32, %arg1: i32, %arg2: memref<2x2x128xbf16, #tpu.memory_space<vmem>>, %arg3: memref<1x128xf32, #tpu.memory_space<vmem>>, %arg4: memref<32x128xf32, #tpu.memory_space<vmem>>, %arg5: memref<2x32xf32, #tpu.memory_space<vmem>>, %arg6: memref<2x32xf32, #tpu.memory_space<vmem>>) attributes {dimension_semantics = [#tpu.dimension_semantics<parallel>, #tpu.dimension_semantics<arbitrary>], iteration_bounds = array<i64: 1, 5>, scalar_prefetch = 0 : i64, scratch_operands = 1 : i64, tpu.core_type = #tpu.core_type<tc>, window_params = [{transform_indices = @transform_0, window_bounds = array<i64: 2, 2, 128>}, {pipeline_mode = #tpu.pipeline_mode<synchronous>, transform_indices = @transform_1, window_bounds = array<i64: 1, 128>}, {pipeline_mode = #tpu.pipeline_mode<synchronous>, transform_indices = @transform_2, window_bounds = array<i64: 32, 128>}, {transform_indices = @transform_3, window_bounds = array<i64: 2, 32>}]} {
    %c0_i32 = arith.constant 0 : i32
    %0 = arith.cmpi eq, %arg1, %c0_i32 : i32
    %1 = arith.extui %0 : i1 to i32
    %c0_i32_0 = arith.constant 0 : i32
    %2 = arith.cmpi ne, %1, %c0_i32_0 : i32
    scf.if %2 {
      %cst_36 = arith.constant 0.000000e+00 : f32
      %87 = vector.broadcast %cst_36 : f32 to vector<2x32xf32>
      %c0_37 = arith.constant 0 : index
      %c0_38 = arith.constant 0 : index
      %88 = vector.load %arg5[%c0_37, %c0_38] : memref<2x32xf32, #tpu.memory_space<vmem>>, vector<2x32xf32>
      tpu.vector_store %arg5[%c0_37, %c0_38], %87 {strides = array<i32>} : memref<2x32xf32, #tpu.memory_space<vmem>>, vector<2x32xf32>,
      %cst_39 = arith.constant 0.000000e+00 : f32
      %89 = vector.broadcast %cst_39 : f32 to vector<2x32xf32>
      %c0_40 = arith.constant 0 : index
      %c0_41 = arith.constant 0 : index
      %90 = vector.load %arg6[%c0_40, %c0_41] : memref<2x32xf32, #tpu.memory_space<vmem>>, vector<2x32xf32>
      tpu.vector_store %arg6[%c0_40, %c0_41], %89 {strides = array<i32>} : memref<2x32xf32, #tpu.memory_space<vmem>>, vector<2x32xf32>,
    } else {
    }
    %c0 = arith.constant 0 : index
    %c0_1 = arith.constant 0 : index
    %3 = vector.load %arg4[%c0, %c0_1] : memref<32x128xf32, #tpu.memory_space<vmem>>, vector<32x128xf32>
    %c0_2 = arith.constant 0 : index
    %c0_3 = arith.constant 0 : index
    %4 = vector.load %arg3[%c0_2, %c0_3] : memref<1x128xf32, #tpu.memory_space<vmem>>, vector<1x128xf32>
    %c0_4 = arith.constant 0 : index
    %c0_5 = arith.constant 0 : index
    %5 = vector.load %arg5[%c0_4, %c0_5] : memref<2x32xf32, #tpu.memory_space<vmem>>, vector<2x32xf32>
    %c0_6 = arith.constant 0 : index
    %c0_7 = arith.constant 0 : index
    %6 = vector.load %arg6[%c0_6, %c0_7] : memref<2x32xf32, #tpu.memory_space<vmem>>, vector<2x32xf32>
    %c0_i32_8 = arith.constant 0 : i32
    %7 = arith.index_cast %c0_i32_8 : i32 to index
    %c0_9 = arith.constant 0 : index
    %c0_10 = arith.constant 0 : index
    %8 = vector.load %arg2[%7, %c0_9, %c0_10] : memref<2x2x128xbf16, #tpu.memory_space<vmem>>, vector<1x2x128xbf16>
    %9 = vector.shape_cast %8 : vector<1x2x128xbf16> to vector<2x128xbf16>
    %10 = arith.extf %9 : vector<2x128xbf16> to vector<2x128xf32>
    %11 = vector.broadcast %4 : vector<1x128xf32> to vector<2x128xf32>
    %12 = arith.addf %10, %11 : vector<2x128xf32>
    %cst = arith.constant dense<0.000000e+00> : vector<2x128xf32>
    %13 = tpu.matmul %5, %3, %cst {dimension_numbers = #tpu.dot_dimension_numbers<[1], [0], [0], [1], [0, 0, 1, 1], [], []>} : vector<2x32xf32>, vector<32x128xf32>, vector<2x128xf32> -> vector<2x128xf32>
    %14 = arith.addf %12, %13 : vector<2x128xf32>
    %15 = vector.extract_strided_slice %14 {offsets = [0, 0], sizes = [2, 32], strides = [1, 1]} : vector<2x128xf32> to vector<2x32xf32>
    %cst_11 = arith.constant 5.000000e-01 : f32
    %16 = vector.broadcast %cst_11 : f32 to vector<2x32xf32>
    %17 = arith.mulf %16, %15 : vector<2x32xf32>
    %18 = math.tanh %17 : vector<2x32xf32>
    %cst_12 = arith.constant 5.000000e-01 : f32
    %19 = vector.broadcast %cst_12 : f32 to vector<2x32xf32>
    %20 = arith.mulf %19, %18 : vector<2x32xf32>
    %cst_13 = arith.constant 5.000000e-01 : f32
    %21 = vector.broadcast %cst_13 : f32 to vector<2x32xf32>
    %22 = arith.addf %20, %21 : vector<2x32xf32>
    %23 = vector.extract_strided_slice %14 {offsets = [0, 32], sizes = [2, 32], strides = [1, 1]} : vector<2x128xf32> to vector<2x32xf32>
    %cst_14 = arith.constant 5.000000e-01 : f32
    %24 = vector.broadcast %cst_14 : f32 to vector<2x32xf32>
    %25 = arith.mulf %24, %23 : vector<2x32xf32>
    %26 = math.tanh %25 : vector<2x32xf32>
    %cst_15 = arith.constant 5.000000e-01 : f32
    %27 = vector.broadcast %cst_15 : f32 to vector<2x32xf32>
    %28 = arith.mulf %27, %26 : vector<2x32xf32>
    %cst_16 = arith.constant 5.000000e-01 : f32
    %29 = vector.broadcast %cst_16 : f32 to vector<2x32xf32>
    %30 = arith.addf %28, %29 : vector<2x32xf32>
    %31 = vector.extract_strided_slice %14 {offsets = [0, 64], sizes = [2, 32], strides = [1, 1]} : vector<2x128xf32> to vector<2x32xf32>
    %32 = math.tanh %31 : vector<2x32xf32>
    %33 = vector.extract_strided_slice %14 {offsets = [0, 96], sizes = [2, 32], strides = [1, 1]} : vector<2x128xf32> to vector<2x32xf32>
    %cst_17 = arith.constant 5.000000e-01 : f32
    %34 = vector.broadcast %cst_17 : f32 to vector<2x32xf32>
    %35 = arith.mulf %34, %33 : vector<2x32xf32>
    %36 = math.tanh %35 : vector<2x32xf32>
    %cst_18 = arith.constant 5.000000e-01 : f32
    %37 = vector.broadcast %cst_18 : f32 to vector<2x32xf32>
    %38 = arith.mulf %37, %36 : vector<2x32xf32>
    %cst_19 = arith.constant 5.000000e-01 : f32
    %39 = vector.broadcast %cst_19 : f32 to vector<2x32xf32>
    %40 = arith.addf %38, %39 : vector<2x32xf32>
    %41 = arith.mulf %30, %6 : vector<2x32xf32>
    %42 = arith.mulf %22, %32 : vector<2x32xf32>
    %43 = arith.addf %41, %42 : vector<2x32xf32>
    %44 = math.tanh %43 : vector<2x32xf32>
    %45 = arith.mulf %40, %44 : vector<2x32xf32>
    %c1_i32 = arith.constant 1 : i32
    %46 = arith.index_cast %c1_i32 : i32 to index
    %c0_20 = arith.constant 0 : index
    %c0_21 = arith.constant 0 : index
    %47 = vector.load %arg2[%46, %c0_20, %c0_21] : memref<2x2x128xbf16, #tpu.memory_space<vmem>>, vector<1x2x128xbf16>
    %48 = vector.shape_cast %47 : vector<1x2x128xbf16> to vector<2x128xbf16>
    %49 = arith.extf %48 : vector<2x128xbf16> to vector<2x128xf32>
    %50 = vector.broadcast %4 : vector<1x128xf32> to vector<2x128xf32>
    %51 = arith.addf %49, %50 : vector<2x128xf32>
    %cst_22 = arith.constant dense<0.000000e+00> : vector<2x128xf32>
    %52 = tpu.matmul %45, %3, %cst_22 {dimension_numbers = #tpu.dot_dimension_numbers<[1], [0], [0], [1], [0, 0, 1, 1], [], []>} : vector<2x32xf32>, vector<32x128xf32>, vector<2x128xf32> -> vector<2x128xf32>
    %53 = arith.addf %51, %52 : vector<2x128xf32>
    %54 = vector.extract_strided_slice %53 {offsets = [0, 0], sizes = [2, 32], strides = [1, 1]} : vector<2x128xf32> to vector<2x32xf32>
    %cst_23 = arith.constant 5.000000e-01 : f32
    %55 = vector.broadcast %cst_23 : f32 to vector<2x32xf32>
    %56 = arith.mulf %55, %54 : vector<2x32xf32>
    %57 = math.tanh %56 : vector<2x32xf32>
    %cst_24 = arith.constant 5.000000e-01 : f32
    %58 = vector.broadcast %cst_24 : f32 to vector<2x32xf32>
    %59 = arith.mulf %58, %57 : vector<2x32xf32>
    %cst_25 = arith.constant 5.000000e-01 : f32
    %60 = vector.broadcast %cst_25 : f32 to vector<2x32xf32>
    %61 = arith.addf %59, %60 : vector<2x32xf32>
    %62 = vector.extract_strided_slice %53 {offsets = [0, 32], sizes = [2, 32], strides = [1, 1]} : vector<2x128xf32> to vector<2x32xf32>
    %cst_26 = arith.constant 5.000000e-01 : f32
    %63 = vector.broadcast %cst_26 : f32 to vector<2x32xf32>
    %64 = arith.mulf %63, %62 : vector<2x32xf32>
    %65 = math.tanh %64 : vector<2x32xf32>
    %cst_27 = arith.constant 5.000000e-01 : f32
    %66 = vector.broadcast %cst_27 : f32 to vector<2x32xf32>
    %67 = arith.mulf %66, %65 : vector<2x32xf32>
    %cst_28 = arith.constant 5.000000e-01 : f32
    %68 = vector.broadcast %cst_28 : f32 to vector<2x32xf32>
    %69 = arith.addf %67, %68 : vector<2x32xf32>
    %70 = vector.extract_strided_slice %53 {offsets = [0, 64], sizes = [2, 32], strides = [1, 1]} : vector<2x128xf32> to vector<2x32xf32>
    %71 = math.tanh %70 : vector<2x32xf32>
    %72 = vector.extract_strided_slice %53 {offsets = [0, 96], sizes = [2, 32], strides = [1, 1]} : vector<2x128xf32> to vector<2x32xf32>
    %cst_29 = arith.constant 5.000000e-01 : f32
    %73 = vector.broadcast %cst_29 : f32 to vector<2x32xf32>
    %74 = arith.mulf %73, %72 : vector<2x32xf32>
    %75 = math.tanh %74 : vector<2x32xf32>
    %cst_30 = arith.constant 5.000000e-01 : f32
    %76 = vector.broadcast %cst_30 : f32 to vector<2x32xf32>
    %77 = arith.mulf %76, %75 : vector<2x32xf32>
    %cst_31 = arith.constant 5.000000e-01 : f32
    %78 = vector.broadcast %cst_31 : f32 to vector<2x32xf32>
    %79 = arith.addf %77, %78 : vector<2x32xf32>
    %80 = arith.mulf %69, %43 : vector<2x32xf32>
    %81 = arith.mulf %61, %71 : vector<2x32xf32>
    %82 = arith.addf %80, %81 : vector<2x32xf32>
    %83 = math.tanh %82 : vector<2x32xf32>
    %84 = arith.mulf %79, %83 : vector<2x32xf32>
    %c2_i32 = arith.constant 2 : i32
    %c0_32 = arith.constant 0 : index
    %c0_33 = arith.constant 0 : index
    %85 = vector.load %arg5[%c0_32, %c0_33] : memref<2x32xf32, #tpu.memory_space<vmem>>, vector<2x32xf32>
    tpu.vector_store %arg5[%c0_32, %c0_33], %84 {strides = array<i32>} : memref<2x32xf32, #tpu.memory_space<vmem>>, vector<2x32xf32>,
    %c0_34 = arith.constant 0 : index
    %c0_35 = arith.constant 0 : index
    %86 = vector.load %arg6[%c0_34, %c0_35] : memref<2x32xf32, #tpu.memory_space<vmem>>, vector<2x32xf32>
    tpu.vector_store %arg6[%c0_34, %c0_35], %82 {strides = array<i32>} : memref<2x32xf32, #tpu.memory_space<vmem>>, vector<2x32xf32>,
    return
  }
  func.func @transform_0(%arg0: i32, %arg1: i32) -> (i32, i32, i32) {
    %c0_i32 = arith.constant 0 : i32
    %c0_i32_0 = arith.constant 0 : i32
    return %arg1, %arg0, %c0_i32 : i32, i32, i32
  }
  func.func @transform_1(%arg0: i32, %arg1: i32) -> (i32, i32) {
    %c0_i32 = arith.constant 0 : i32
    %c0_i32_0 = arith.constant 0 : i32
    %c0_i32_1 = arith.constant 0 : i32
    return %c0_i32, %c0_i32_0 : i32, i32
  }
  func.func @transform_2(%arg0: i32, %arg1: i32) -> (i32, i32) {
    %c0_i32 = arith.constant 0 : i32
    %c0_i32_0 = arith.constant 0 : i32
    %c0_i32_1 = arith.constant 0 : i32
    return %c0_i32, %c0_i32_0 : i32, i32
  }
  func.func @transform_3(%arg0: i32, %arg1: i32) -> (i32, i32) {
    %c0_i32 = arith.constant 0 : i32
    %c0_i32_0 = arith.constant 0 : i32
    return %arg0, %c0_i32 : i32, i32
  }
}

</mosaic_0001>

<llo_original>
// kernel: tpu_custom_call.1
$region0: #{tpu_custom_call.1}
  #allocation0 [shape = 'u32[]', space=smem, size = 0x4, offset = 0x4, fixed_abs, tag = 'smem constant byte address 0x4 - core index']
  #allocation1 [shape = 'u32[144,128]{1,0:T(1,128)}', space=vmem, size = 0x12000, scoped, tag = 'internal scratch']
  #allocation2 [shape = 'f32[2,32]{1,0:T(2,128)}', space=vmem, size = 0x400, scoped, tag = 'scratch operand']
  %s0 = inlined_call_operand.hbm [shape: bf16[10,2,128], index: 0, kind: input, shape index: {}]
  %s1 = inlined_call_operand.vmem [shape: f32[1,128], index: 1, kind: input, shape index: {}]
  %s2 = inlined_call_operand.hbm [shape: f32[32,128], index: 2, kind: input, shape index: {}]
  %s3 = inlined_call_operand.hbm [shape: f32[2,32], index: 3, kind: output, shape index: {}]
  %s4 = sld [smem:[#allocation0]]
  $region57: #{tpu_custom_call.1} parent=0
    _
  %s6 = ssub.s32 1, %s4
  %s7 = scalar_select 0, %s6, %s4
  $region1: #{tpu_custom_call.1} parent=0
    #allocation3 [shape = 'u8[2048]{0}', space=vmem, size = 0x800, scoped, tag = 'input window, operand 0']
    #allocation4 [shape = 's32[2]{0}', space=sflag, size = 0x8, scoped, tag = 'scoped memory for tpu_custom_call.1']
    #allocation5 [shape = 's32[2]{0}', space=sflag, size = 0x8, scoped, tag = 'scoped memory for tpu_custom_call.1']
    #allocation6 [shape = 'u8[16384]{0}', space=vmem, size = 0x4000, scoped, tag = 'input window, operand 2, single buffered']
    #allocation7 [shape = 's32[1]{0}', space=sflag, size = 0x4, scoped, tag = 'scoped memory for tpu_custom_call.1']
    #allocation8 [shape = 'u8[1024]{0}', space=vmem, size = 0x400, scoped, tag = 'output window, operand 0, single buffered']
    %8 = vsyncpa [#allocation4], 0
    %s9 = scalar_lea.sflag [#allocation4], 1
    %10 = vsyncpa %s9, 0
    %11 = vsyncpa [#allocation7], 0
    %12 = vsyncpa [#allocation5], 0
    loop: start=0, step=1, limit=7
    $region2: #{tpu_custom_call.1} parent=1 // loop_pre_header
      _
    $region3: #{tpu_custom_call.1} parent=1 // loop_header
      %s14 = sphi 0, %s18
      %p15 = scmp.ge.s32.totalorder %s14, 7
      %s21 = sphi 0, %s33
      %s22 = sphi 0, %s29
      %s23 = sphi 0, %s21
      %s24 = sphi 0, %s22
      %s25 = sphi 0, %s23
      %s26 = sphi 0, %s24
      %s38 = sphi 0, %s40
      %s41 = sphi 0, %s38
      %s42 = sphi 0, %s41
      %s58 = sphi 0, %s42
      %s62 = sphi 0, %s62
      %s64 = sphi 0, %s62
      %s65 = sphi 0, %s64
      %s79 = sphi 0, %s65
      %s83 = sphi 0, %s83
      %s85 = sphi 0, %s83
      %s86 = sphi 0, %s85
      %s100 = sphi 0, %s86
      %s106 = sphi 0, %s108
      %s109 = sphi 0, %s106
      %s110 = sphi 0, %s109
      %s126 = sphi 0, %s110
    $region4: #{tpu_custom_call.1} parent=1 // loop_header_branch
      %17 = sbr.rel (%p15) target = $region8
    $region5: #{tpu_custom_call.1} parent=1 // loop_body
      %s19 = ssub.s32 %s14, 1
      %s20 = ssub.s32 %s14, 2
      %s27 = sadd.s32 1, %s22
      %p28 = scmp.ge.s32.totalorder %s27, 5
      %s29 = scalar_select %p28, 0, %s27
      %s30 = sadd.s32 1, %s21
      %s31 = scalar_select %p28, %s30, %s21
      %p32 = scmp.ge.s32.totalorder %s31, 1
      %s33 = scalar_select %p32, 0, %s31
      %s34 = ssub.s32 %s22, %s29
      %s35 = ssub.s32 %s21, %s33
      %s36 = sor.u32 %s34, %s35
      %p37 = scmp.eq.s32.totalorder %s36, 0
      %s39 = sadd.s32 %s38, 1
      %s40 = scalar_select %p37, %s38, %s39
      %p43 = pneg %p37
      %p44 = scmp.eq.s32.totalorder %s14, 4
      %p45 = por %p43, %p44
      %p46 = scmp.ne.s32.totalorder %s38, %s41
      %p47 = scmp.eq.s32.totalorder %s14, 0
      %p48 = por %p46, %p47
      %p49 = scmp.ne.s32.totalorder %s38, %s41
      %p50 = scmp.eq.s32.totalorder %s19, 4
      %p51 = por %p49, %p50
      %p52 = scmp.ne.s32.totalorder %s41, %s42
      %p53 = scmp.eq.s32.totalorder %s19, 0
      %p54 = por %p52, %p53
      %p55 = scmp.ne.s32.totalorder %s41, %s42
      %p56 = scmp.eq.s32.totalorder %s20, 4
      %p57 = por %p55, %p56
      %p59 = scmp.ne.s32.totalorder %s42, %s58
      %p60 = scmp.eq.s32.totalorder %s20, 0
      %p61 = por %p59, %p60
      %s63 = sadd.s32 %s62, 1
      %p66 = scmp.eq.s32.totalorder %s14, 4
      %p67 = scmp.ne.s32.totalorder %s62, %s64
      %p68 = scmp.eq.s32.totalorder %s14, 0
      %p69 = por %p67, %p68
      %p70 = scmp.ne.s32.totalorder %s62, %s64
      %p71 = scmp.eq.s32.totalorder %s19, 4
      %p72 = por %p70, %p71
      %p73 = scmp.ne.s32.totalorder %s64, %s65
      %p74 = scmp.eq.s32.totalorder %s19, 0
      %p75 = por %p73, %p74
      %p76 = scmp.ne.s32.totalorder %s64, %s65
      %p77 = scmp.eq.s32.totalorder %s20, 4
      %p78 = por %p76, %p77
      %p80 = scmp.ne.s32.totalorder %s65, %s79
      %p81 = scmp.eq.s32.totalorder %s20, 0
      %p82 = por %p80, %p81
      %s84 = sadd.s32 %s83, 1
      %p87 = scmp.eq.s32.totalorder %s14, 4
      %p88 = scmp.ne.s32.totalorder %s83, %s85
      %p89 = scmp.eq.s32.totalorder %s14, 0
      %p90 = por %p88, %p89
      %p91 = scmp.ne.s32.totalorder %s83, %s85
      %p92 = scmp.eq.s32.totalorder %s19, 4
      %p93 = por %p91, %p92
      %p94 = scmp.ne.s32.totalorder %s85, %s86
      %p95 = scmp.eq.s32.totalorder %s19, 0
      %p96 = por %p94, %p95
      %p97 = scmp.ne.s32.totalorder %s85, %s86
      %p98 = scmp.eq.s32.totalorder %s20, 4
      %p99 = por %p97, %p98
      %p101 = scmp.ne.s32.totalorder %s86, %s100
      %p102 = scmp.eq.s32.totalorder %s20, 0
      %p103 = por %p101, %p102
      %s104 = ssub.s32 %s21, %s33
      %p105 = scmp.eq.s32.totalorder %s104, 0
      %s107 = sadd.s32 %s106, 1
      %s108 = scalar_select %p105, %s106, %s107
      %p111 = pneg %p105
      %p112 = scmp.eq.s32.totalorder %s14, 4
      %p113 = por %p111, %p112
      %p114 = scmp.ne.s32.totalorder %s106, %s109
      %p115 = scmp.eq.s32.totalorder %s14, 0
      %p116 = por %p114, %p115
      %p117 = scmp.ne.s32.totalorder %s106, %s109
      %p118 = scmp.eq.s32.totalorder %s19, 4
      %p119 = por %p117, %p118
      %p120 = scmp.ne.s32.totalorder %s109, %s110
      %p121 = scmp.eq.s32.totalorder %s19, 0
      %p122 = por %p120, %p121
      %p123 = scmp.ne.s32.totalorder %s109, %s110
      %p124 = scmp.eq.s32.totalorder %s20, 4
      %p125 = por %p123, %p124
      %p127 = scmp.ne.s32.totalorder %s110, %s126
      %p128 = scmp.eq.s32.totalorder %s20, 0
      %p129 = por %p127, %p128
      %p130 = scmp.le.s32.totalorder 1, %s14
      %p131 = scmp.lt.s32.totalorder %s14, 6
      %p132 = pnand %p130, %p131
      %p133 = pneg %p132
      // Predicated region
      $region9: #{tpu_custom_call.1} parent=5 // pred_check
        _
      $region10: #{tpu_custom_call.1} parent=5 // pred_check_branch
        %135 = sbr.rel (%p132) target = $region12
      $region11: #{tpu_custom_call.1} parent=5 // pred_region
        %s136 = ssub.s32 %s14, 1
        // Predicated region
        $region13: #{tpu_custom_call.1} parent=11 // pred_check
          %p137 = pneg %p75
        $region14: #{tpu_custom_call.1} parent=11 // pred_check_branch
          %139 = sbr.rel (%p137) target = $region16
        $region15: #{tpu_custom_call.1} parent=11 // pred_region
          _
        $region16: #{tpu_custom_call.1} parent=11 // pred_fallthru
          _
        // Predicated region
        $region17: #{tpu_custom_call.1} parent=11 // pred_check
          %p140 = pneg %p96
        $region18: #{tpu_custom_call.1} parent=11 // pred_check_branch
          %142 = sbr.rel (%p140) target = $region20
        $region19: #{tpu_custom_call.1} parent=11 // pred_region
          %s144 = ssub.s32 512, 512
          %145 = vsyncadd [#allocation7], %s144
          %s146 = sshll.u32 [#allocation6], 4
          %s147 = int_to_ptr.vmem [resolvable:$true] %s146
          %152 = dma.hbm_to_vmem [thread:$0]  %s2, 512, %s147, [#allocation7], 128, 128, 8
        $region20: #{tpu_custom_call.1} parent=11 // pred_fallthru
          _
      $region12: #{tpu_custom_call.1} parent=5 // pred_fallthru
        _
      %p153 = scmp.lt.s32.totalorder %s14, 5
      // Predicated region
      $region21: #{tpu_custom_call.1} parent=5 // pred_check
        %p154 = pneg %p153
      $region22: #{tpu_custom_call.1} parent=5 // pred_check_branch
        %156 = sbr.rel (%p154) target = $region24
      $region23: #{tpu_custom_call.1} parent=5 // pred_region
        // Predicated region
        $region25: #{tpu_custom_call.1} parent=23 // pred_check
          %p157 = pneg %p48
        $region26: #{tpu_custom_call.1} parent=23 // pred_check_branch
          %159 = sbr.rel (%p157) target = $region28
        $region27: #{tpu_custom_call.1} parent=23 // pred_region
          %s160 = sand.u32 %s38, 1
          %s161 = scalar_lea.sflag [#allocation4], %s160
          %s162 = sand.u32 %s38, 1
          %s163 = smul.addr %s162, 2
          %s164 = scalar_lea.vmem [#allocation3], %s163
          %s165 = smul.u32 2, %s22
          %s167 = ssub.s32 32, 32
          %168 = vsyncadd %s161, %s167
          %s169 = sadd.s32 %s21, %s165
          %s170 = smul.addr %s169, 16
          %s171 = scalar_lea.hbm %s0, %s170
          %s172 = sshll.u32 %s164, 4
          %s173 = int_to_ptr.vmem [resolvable:$true] %s172
          %178 = dma.hbm_to_vmem [thread:$0]  %s171, 32, %s173, %s161, 16, 16, 1
        $region28: #{tpu_custom_call.1} parent=23 // pred_fallthru
          _
      $region24: #{tpu_custom_call.1} parent=5 // pred_fallthru
        _
      %p179 = scmp.le.s32.totalorder 1, %s14
      %p180 = scmp.lt.s32.totalorder %s14, 6
      %p181 = pnand %p179, %p180
      %p182 = pneg %p181
      // Predicated region
      $region29: #{tpu_custom_call.1} parent=5 // pred_check
        _
      $region30: #{tpu_custom_call.1} parent=5 // pred_check_branch
        %184 = sbr.rel (%p181) target = $region32
      $region31: #{tpu_custom_call.1} parent=5 // pred_region
        %s185 = ssub.s32 %s14, 1
        %s186 = sand.u32 %s41, 1
        %s187 = scalar_lea.sflag [#allocation4], %s186
        %s188 = sand.u32 %s41, 1
        %s189 = smul.addr %s188, 2
        %s190 = scalar_lea.vmem [#allocation3], %s189
        // Predicated region
        $region33: #{tpu_custom_call.1} parent=31 // pred_check
          %p191 = pneg %p54
        $region34: #{tpu_custom_call.1} parent=31 // pred_check_branch
          %193 = sbr.rel (%p191) target = $region36
        $region35: #{tpu_custom_call.1} parent=31 // pred_region
          %194 = dma.done %s187, 32
        $region36: #{tpu_custom_call.1} parent=31 // pred_fallthru
          _
        // Predicated region
        $region37: #{tpu_custom_call.1} parent=31 // pred_check
          %p195 = pneg %p96
        $region38: #{tpu_custom_call.1} parent=31 // pred_check_branch
          %197 = sbr.rel (%p195) target = $region40
        $region39: #{tpu_custom_call.1} parent=31 // pred_region
          %198 = dma.done [#allocation7], 512
        $region40: #{tpu_custom_call.1} parent=31 // pred_fallthru
          _
        %s199 = sand.u32 %s41, 1
        %s200 = scalar_lea.sflag [#allocation4], %s199
        %s201 = sand.u32 %s41, 1
        %s202 = smul.addr %s201, 2
        %s203 = scalar_lea.vmem [#allocation3], %s202
        %p204 = pneg %p54
        %p205 = pneg %p51
        %p206 = pneg %p75
        %p207 = pneg %p72
        %p208 = pneg %p96
        %p209 = pneg %p93
        %p210 = pneg %p122
        %p211 = pneg %p119
        %s212 = smul.u32 2, %s24
        %p213 = scmp.eq.s32.totalorder %s24, 0
        // Predicated region
        $region41: #{tpu_custom_call.1} parent=31 // pred_check
          %p214 = pneg %p213
        $region42: #{tpu_custom_call.1} parent=31 // pred_check_branch
          %216 = sbr.rel (%p214) target = $region44
        $region43: #{tpu_custom_call.1} parent=31 // pred_region
          %vm217 = vcmask 254976
          %218 = vst.msk [vmem:[#allocation8] sm:$0x3] %vm217, 0.0
          %219 = vst.msk [vmem:[#allocation2] sm:$0x3] %vm217, 0.0
        $region44: #{tpu_custom_call.1} parent=31 // pred_fallthru
          _
        %v220 = vld [vmem:[#allocation6] sm:$0xff]
        %v221 = vld [vmem:[#allocation6 + $0x8] sm:$0xff]
        %v222 = vld [vmem:[#allocation6 + $0x10] sm:$0xff]
        %v223 = vld [vmem:[#allocation6 + $0x18] sm:$0xff]
        %v224 = vld [vmem:[%s1] sm:$0x1]
        %v225 = vld [vmem:[#allocation8] sm:$0x3]
        %v226 = vld [vmem:[#allocation2] sm:$0x3]
        %v227 = vld [vmem:[%s190] sm:$0x1]
        %v228 = vunpack.c.l.bf16 %v227
        %v230 = vlaneseq
        %v231 = vshrl.u32 %v230, 7
        %v232 = vsub.s32 0, %v231
        %v233 = vrot.slane %v224, %v232
        %v235 = vadd.f32 %v228, %v233
        %vm236 = vcmask 261120
        %v238 = vsel %vm236, %v225, 0
        %240 = vmatprep.subr.mxu0 0.0
        %241 = vmatpush1.msra.mxu0 %v220
        %242 = vmatprep.subr.mxu0 0.0
        %243 = vmatpush1.msra.mxu0 %v221
        %244 = vmatprep.subr.mxu0 0.0
        %245 = vmatpush1.msra.mxu0 %v222
        %246 = vmatprep.subr.mxu0 0.0
        %247 = vmatpush1.msra.mxu0 %v223
        %248 = vmatprep.subr.mxu0 0.0
        %249 = vmatpush1.msra.mxu0 0.0
        %250 = vmatprep.subr.mxu0 0.0
        %251 = vmatpush1.msra.mxu0 0.0
        %252 = vmatprep.subr.mxu0 0.0
        %253 = vmatpush1.msra.mxu0 0.0
        %254 = vmatprep.subr.mxu0 0.0
        %255 = vmatpush1.msra.mxu0 0.0
        %256 = vmatprep.subr.mxu0 0.0
        %257 = vmatpush1.msra.mxu0 0.0
        %258 = vmatprep.subr.mxu0 0.0
        %259 = vmatpush1.msra.mxu0 0.0
        %260 = vmatprep.subr.mxu0 0.0
        %261 = vmatpush1.msra.mxu0 0.0
        %262 = vmatprep.subr.mxu0 0.0
        %263 = vmatpush1.msra.mxu0 0.0
        %264 = vmatprep.subr.mxu0 0.0
        %265 = vmatpush1.msra.mxu0 0.0
        %266 = vmatprep.subr.mxu0 0.0
        %267 = vmatpush1.msra.mxu0 0.0
        %268 = vmatprep.subr.mxu0 0.0
        %269 = vmatpush1.msra.mxu0 0.0
        %270 = vmatprep.subr.mxu0 0.0
        %271 = vmatpush1.msra.mxu0 0.0
        %272 = vmatprep.subr.mxu0 0.0
        %273 = vmatpush1.msra.mxu0 0.0
        %274 = vmatprep.subr.mxu0 0.0
        %275 = vmatpush1.msra.mxu0 0.0
        %276 = vmatprep.subr.mxu0 0.0
        %277 = vmatpush1.msra.mxu0 0.0
        %278 = vmatprep.subr.mxu0 0.0
        %279 = vmatpush1.msra.mxu0 0.0
        %280 = vmatprep.subr.mxu0 0.0
        %281 = vmatpush1.msra.mxu0 0.0
        %282 = vmatprep.subr.mxu0 0.0
        %283 = vmatpush1.msra.mxu0 0.0
        %284 = vmatprep.subr.mxu0 0.0
        %285 = vmatpush1.msra.mxu0 0.0
        %286 = vmatprep.subr.mxu0 0.0
        %287 = vmatpush1.msra.mxu0 0.0
        %288 = vmatprep.subr.mxu0 0.0
        %289 = vmatpush1.msra.mxu0 0.0
        %290 = vmatprep.subr.mxu0 0.0
        %291 = vmatpush1.msra.mxu0 0.0
        %292 = vmatprep.subr.mxu0 0.0
        %293 = vmatpush1.msra.mxu0 0.0
        %294 = vmatprep.subr.mxu0 0.0
        %295 = vmatpush1.msra.mxu0 0.0
        %296 = vmatprep.subr.mxu0 0.0
        %297 = vmatpush1.msra.mxu0 0.0
        %298 = vmatprep.subr.mxu0 0.0
        %299 = vmatpush1.msra.mxu0 0.0
        %300 = vmatprep.subr.mxu0 0.0
        %301 = vmatpush1.msra.mxu0 0.0
        %302 = vmatprep.subr.mxu0 0.0
        %303 = vmatpush1.msra.mxu0 0.0
        %304 = vmatprep.mubr.f32.mxu0 0.0
        %305 = vmatmul.mubr.f32.gmra.mrb[0].mxu0 %v238
        %v306 = vpop.f32.mrb[0].mxu0
        %v307 = vadd.f32 0.0, %v306
        %v308 = vpop.f32.mrb[0].mxu0
        %309 = vdwg.mxu0
        %v310 = vadd.f32 %v235, %v307
        %v311 = vmul.f32 %v310, 0.5
        %v312 = vtanh.pop %v311
        %v313 = vmul.f32 %v312, 0.5
        %v314 = vadd.f32 %v313, 0.5
        %v315 = vtanh.pop %v310
        %v318 = vunpack.c.l.s4 1983009808
        %v319 = vunpack.c.0.s8 %v318
        %v320 = vlaneseq
        %v321 = vshrl.u32 %v320, 7
        %v322 = vsub.s32 %v319, %v321
        %v323 = vrot.slane %v226, %v322
        %324 = vrot.lane.b32.xlu0 %v323, 32
        %v325 = vpop.permute.xlu0 %324
        %v327 = vmul.f32 %v314, %v325
        %329 = vrot.lane.b32.xlu0 %v315, 64
        %v330 = vpop.permute.xlu0 %329
        %v332 = vmul.f32 %v314, %v330
        %334 = vrot.lane.b32.xlu0 %v332, 32
        %v335 = vpop.permute.xlu0 %334
        %v337 = vadd.f32 %v327, %v335
        %v338 = vtanh.pop %v337
        %340 = vrot.lane.b32.xlu0 %v338, 64
        %v341 = vpop.permute.xlu0 %340
        %v343 = vmul.f32 %v314, %v341
        %s344 = scalar_lea.vmem %s190, 1 [#allocation3]
        %v345 = vld [vmem:[%s344] sm:$0x1]
        %v346 = vunpack.c.l.bf16 %v345
        %v347 = vadd.f32 %v346, %v233
        %v350 = vunpack.c.l.s4 1983009808
        %v351 = vunpack.c.0.s8 %v350
        %v352 = vlaneseq
        %v353 = vshrl.u32 %v352, 7
        %v354 = vsub.s32 %v351, %v353
        %v355 = vrot.slane %v343, %v354
        %356 = vrot.lane.b32.xlu0 %v355, 32
        %v357 = vpop.permute.xlu0 %356
        %v358 = vsel %vm236, %v357, 0
        %360 = vmatprep.subr.mxu0 0.0
        %361 = vmatpush1.msra.mxu0 %v220
        %362 = vmatprep.subr.mxu0 0.0
        %363 = vmatpush1.msra.mxu0 %v221
        %364 = vmatprep.subr.mxu0 0.0
        %365 = vmatpush1.msra.mxu0 %v222
        %366 = vmatprep.subr.mxu0 0.0
        %367 = vmatpush1.msra.mxu0 %v223
        %368 = vmatprep.subr.mxu0 0.0
        %369 = vmatpush1.msra.mxu0 0.0
        %370 = vmatprep.subr.mxu0 0.0
        %371 = vmatpush1.msra.mxu0 0.0
        %372 = vmatprep.subr.mxu0 0.0
        %373 = vmatpush1.msra.mxu0 0.0
        %374 = vmatprep.subr.mxu0 0.0
        %375 = vmatpush1.msra.mxu0 0.0
        %376 = vmatprep.subr.mxu0 0.0
        %377 = vmatpush1.msra.mxu0 0.0
        %378 = vmatprep.subr.mxu0 0.0
        %379 = vmatpush1.msra.mxu0 0.0
        %380 = vmatprep.subr.mxu0 0.0
        %381 = vmatpush1.msra.mxu0 0.0
        %382 = vmatprep.subr.mxu0 0.0
        %383 = vmatpush1.msra.mxu0 0.0
        %384 = vmatprep.subr.mxu0 0.0
        %385 = vmatpush1.msra.mxu0 0.0
        %386 = vmatprep.subr.mxu0 0.0
        %387 = vmatpush1.msra.mxu0 0.0
        %388 = vmatprep.subr.mxu0 0.0
        %389 = vmatpush1.msra.mxu0 0.0
        %390 = vmatprep.subr.mxu0 0.0
        %391 = vmatpush1.msra.mxu0 0.0
        %392 = vmatprep.subr.mxu0 0.0
        %393 = vmatpush1.msra.mxu0 0.0
        %394 = vmatprep.subr.mxu0 0.0
        %395 = vmatpush1.msra.mxu0 0.0
        %396 = vmatprep.subr.mxu0 0.0
        %397 = vmatpush1.msra.mxu0 0.0
        %398 = vmatprep.subr.mxu0 0.0
        %399 = vmatpush1.msra.mxu0 0.0
        %400 = vmatprep.subr.mxu0 0.0
        %401 = vmatpush1.msra.mxu0 0.0
        %402 = vmatprep.subr.mxu0 0.0
        %403 = vmatpush1.msra.mxu0 0.0
        %404 = vmatprep.subr.mxu0 0.0
        %405 = vmatpush1.msra.mxu0 0.0
        %406 = vmatprep.subr.mxu0 0.0
        %407 = vmatpush1.msra.mxu0 0.0
        %408 = vmatprep.subr.mxu0 0.0
        %409 = vmatpush1.msra.mxu0 0.0
        %410 = vmatprep.subr.mxu0 0.0
        %411 = vmatpush1.msra.mxu0 0.0
        %412 = vmatprep.subr.mxu0 0.0
        %413 = vmatpush1.msra.mxu0 0.0
        %414 = vmatprep.subr.mxu0 0.0
        %415 = vmatpush1.msra.mxu0 0.0
        %416 = vmatprep.subr.mxu0 0.0
        %417 = vmatpush1.msra.mxu0 0.0
        %418 = vmatprep.subr.mxu0 0.0
        %419 = vmatpush1.msra.mxu0 0.0
        %420 = vmatprep.subr.mxu0 0.0
        %421 = vmatpush1.msra.mxu0 0.0
        %422 = vmatprep.subr.mxu0 0.0
        %423 = vmatpush1.msra.mxu0 0.0
        %424 = vmatprep.mubr.f32.mxu0 0.0
        %425 = vmatmul.mubr.f32.gmra.mrb[0].mxu0 %v358
        %v426 = vpop.f32.mrb[0].mxu0
        %v427 = vadd.f32 0.0, %v426
        %v428 = vpop.f32.mrb[0].mxu0
        %429 = vdwg.mxu0
        %v430 = vadd.f32 %v347, %v427
        %v431 = vmul.f32 %v430, 0.5
        %v432 = vtanh.pop %v431
        %v433 = vmul.f32 %v432, 0.5
        %v434 = vadd.f32 %v433, 0.5
        %v435 = vtanh.pop %v430
        %v436 = vmul.f32 %v434, %v337
        %438 = vrot.lane.b32.xlu0 %v435, 64
        %v439 = vpop.permute.xlu0 %438
        %v441 = vmul.f32 %v434, %v439
        %443 = vrot.lane.b32.xlu0 %v441, 32
        %v444 = vpop.permute.xlu0 %443
        %v446 = vadd.f32 %v436, %v444
        %v447 = vtanh.pop %v446
        %449 = vrot.lane.b32.xlu0 %v447, 64
        %v450 = vpop.permute.xlu0 %449
        %v452 = vmul.f32 %v434, %v450
        %v455 = vunpack.c.l.s4 1983009808
        %v456 = vunpack.c.0.s8 %v455
        %v457 = vlaneseq
        %v458 = vshrl.u32 %v457, 7
        %v459 = vsub.s32 %v456, %v458
        %v460 = vrot.slane %v452, %v459
        %461 = vrot.lane.b32.xlu0 %v460, 32
        %v462 = vpop.permute.xlu0 %461
        %vm464 = vcmask 254976
        %465 = vst.msk [vmem:[#allocation8] sm:$0x3] %vm464, %v462
        %v468 = vunpack.c.l.s4 1983009808
        %v469 = vunpack.c.0.s8 %v468
        %v470 = vlaneseq
        %v471 = vshrl.u32 %v470, 7
        %v472 = vsub.s32 %v469, %v471
        %v473 = vrot.slane %v446, %v472
        %474 = vrot.lane.b32.xlu0 %v473, 96
        %v475 = vpop.permute.xlu0 %474
        %477 = vst.msk [vmem:[#allocation2] sm:$0x3] %vm464, %v475
        // Predicated region
        $region45: #{tpu_custom_call.1} parent=31 // pred_check
          %p478 = pneg %p119
        $region46: #{tpu_custom_call.1} parent=31 // pred_check_branch
          %480 = sbr.rel (%p478) target = $region48
        $region47: #{tpu_custom_call.1} parent=31 // pred_region
          %s482 = ssub.s32 32, 32
          %483 = vsyncadd [#allocation5], %s482
          %s484 = smul.addr %s23, 32
          %s485 = scalar_lea.hbm %s3, %s484
          %s487 = sshll.u32 [#allocation8], 4
          %s488 = int_to_ptr.vmem [resolvable:$true] %s487
          %490 = dma.vmem_to_hbm [thread:$0]  %s488, 32, %s485, [#allocation5]
        $region48: #{tpu_custom_call.1} parent=31 // pred_fallthru
          _
        // Predicated region
        $region49: #{tpu_custom_call.1} parent=31 // pred_check
          %p491 = pneg %p119
        $region50: #{tpu_custom_call.1} parent=31 // pred_check_branch
          %493 = sbr.rel (%p491) target = $region52
        $region51: #{tpu_custom_call.1} parent=31 // pred_region
          %494 = dma.done [#allocation5], 32
        $region52: #{tpu_custom_call.1} parent=31 // pred_fallthru
          _
      $region32: #{tpu_custom_call.1} parent=5 // pred_fallthru
        _
      %p495 = scmp.le.s32.totalorder 2, %s14
      // Predicated region
      $region53: #{tpu_custom_call.1} parent=5 // pred_check
        %p496 = pneg %p495
      $region54: #{tpu_custom_call.1} parent=5 // pred_check_branch
        %498 = sbr.rel (%p496) target = $region56
      $region55: #{tpu_custom_call.1} parent=5 // pred_region
        %s499 = ssub.s32 %s14, 2
      $region56: #{tpu_custom_call.1} parent=5 // pred_fallthru
        _
    $region6: #{tpu_custom_call.1} parent=1 // loop_footer
      %s18 = sadd.s32 1, %s14
    $region7: #{tpu_custom_call.1} parent=1 // loop_footer_branch
      %13 = sbr.rel target = $region3
    $region8: #{tpu_custom_call.1} parent=1 // loop_exit
      _
    %500 = vsyncpa [#allocation4], 1
    %s501 = scalar_lea.sflag [#allocation4], 1
    %502 = vsyncpa %s501, 1
    %503 = vsyncpa [#allocation7], 1
    %504 = vsyncpa [#allocation5], 1
    %s505 = scalar_lea.sflag [#allocation5], 1
    %506 = vsyncpa %s505, 1

</llo_original>
